<compile_context>
chip_gen: v7x
topology: tpu7x:2x2x1
jax: 0.10.0
libtpu: 0.0.40
codegen_flags: <defaults>
</compile_context>

<pallas_src>
import jax
import jax.numpy as jnp
from jax.experimental import pallas as pl
from jax.experimental.pallas import tpu as pltpu


def action_encoder_kernel(x_ref, h0_ref, c0_ref,
                          w_emb_ref, b_emb_ref,
                          w_ih_ref, w_hh_ref, b_ref,
                          out_ref):
    """Single invocation runs the full obs_len recurrence.

    x_ref   : (obs_len*B, 2)  raw coordinates, flattened in the wrapper
    h0/c0   : (B, H)          initial hidden / cell state (B padded to mult. of 8)
    w_emb   : (2, D)          inputEmbedding weight (transposed vs torch)
    b_emb   : (1, D)          inputEmbedding bias
    w_ih    : (D, 4H)         LSTMCell weight_ih (transposed; i/f/o cols *0.5)
    w_hh    : (H, 4H)         LSTMCell weight_hh (transposed; i/f/o cols *0.5)
    b       : (1, 4H)         bias_ih + bias_hh (i/f/o cols *0.5)
    out_ref : (B, H)          final hidden state
    """
    TB = x_ref.shape[0]
    B, H = h0_ref.shape
    T = TB // B  # obs_len (static)

    # ---- Prologue (off the serial chain) -----------------------------------
    # Embedding Linear(2 -> D) + ReLU as two VPU broadcast-FMAs (K=2 is far too
    # small for the MXU), then ONE batched MXU matmul for all timesteps'
    # input-side gate terms: gates_x = relu(x @ W_emb + b_emb) @ W_ih + b.
    x = x_ref[...]                              # (T*B, 2)
    w_emb = w_emb_ref[...]                      # (2, D)
    emb = (x[:, 0:1] * w_emb[0:1, :]
           + x[:, 1:2] * w_emb[1:2, :]
           + b_emb_ref[...])
    emb = jnp.maximum(emb, 0.0)                 # (T*B, D)
    gates_x = jnp.dot(emb, w_ih_ref[...],
                      preferred_element_type=jnp.float32) + b_ref[...]  # (T*B, 4H)

    # ---- Serial recurrence: h @ W_hh + elementwise gate math per step -------
    w_hh = w_hh_ref[...]
    h = h0_ref[...]
    c = c0_ref[...]

    for t in range(T):  # static, fully unrolled (obs_len is small)
        gates = gates_x[t * B:(t + 1) * B, :] + jnp.dot(
            h, w_hh, preferred_element_type=jnp.float32)          # (B, 4H)
        # Single full-width EUP tanh; sigmoid segments recovered as 0.5*t+0.5
        # because i/f/o weight/bias columns were pre-scaled by 0.5.
        tg = jnp.tanh(gates)
        i_gate = 0.5 * tg[:, 0 * H:1 * H] + 0.5
        f_gate = 0.5 * tg[:, 1 * H:2 * H] + 0.5
        g_gate = tg[:, 2 * H:3 * H]
        o_gate = 0.5 * tg[:, 3 * H:4 * H] + 0.5
        c = f_gate * c + i_gate * g_gate
        h = o_gate * jnp.tanh(c)

    out_ref[...] = h


def action_encoder_forward(obs_traj, h0, c0, params, obs_len):
    """obs_traj: (seq, batch, 2) float32; returns (batch, H) float32."""
    seq, batch, _ = obs_traj.shape
    H = params["w_hh"].shape[0]

    # Pad batch to a multiple of 8 (sublane alignment); padded rows discarded.
    B = ((batch + 7) // 8) * 8
    pad = B - batch

    x = obs_traj[:obs_len]                       # only first obs_len steps feed the LSTM
    if pad:
        x = jnp.pad(x, ((0, 0), (0, pad), (0, 0)))
        h0p = jnp.pad(h0, ((0, pad), (0, 0)))
        c0p = jnp.pad(c0, ((0, pad), (0, 0)))
    else:
        h0p, c0p = h0, c0
    x2 = x.reshape(obs_len * B, 2)               # free HBM-side reshape (row-major)

    # Sigmoid-via-tanh trick: scale i/f/o output columns of w_ih/w_hh/b by 0.5
    # (g columns untouched) so the kernel needs a single tanh per step.
    col_scale = jnp.concatenate(
        [jnp.full((1, H), 0.5, jnp.float32),     # i
         jnp.full((1, H), 0.5, jnp.float32),     # f
         jnp.ones((1, H), jnp.float32),          # g
         jnp.full((1, H), 0.5, jnp.float32)],    # o
        axis=1)
    w_ih_s = params["w_ih"] * col_scale
    w_hh_s = params["w_hh"] * col_scale
    b_s = params["b"] * col_scale

    vmem = lambda: pl.BlockSpec(memory_space=pltpu.MemorySpace.VMEM)
    out = pl.pallas_call(
        action_encoder_kernel,
        out_shape=jax.ShapeDtypeStruct((B, H), jnp.float32),
        in_specs=[vmem() for _ in range(8)],
        out_specs=vmem(),
    )(x2, h0p, c0p, params["w_emb"], params["b_emb"], w_ih_s, w_hh_s, b_s)
    return out[:batch]


def action_encoder_reference(obs_traj, h0, c0, params, obs_len):
    """Pure-JAX reference mirroring the PyTorch forward (unscaled sigmoid+tanh)."""
    H = params["w_hh"].shape[0]
    h, c = h0, c0
    for t in range(obs_len):
        x = obs_traj[t]  # (batch, 2)
        emb = jnp.maximum(x @ params["w_emb"] + params["b_emb"], 0.0)
        gates = emb @ params["w_ih"] + h @ params["w_hh"] + params["b"]
        i = jax.nn.sigmoid(gates[:, 0 * H:1 * H])
        f = jax.nn.sigmoid(gates[:, 1 * H:2 * H])
        g = jnp.tanh(gates[:, 2 * H:3 * H])
        o = jax.nn.sigmoid(gates[:, 3 * H:4 * H])
        c = f * c + i * g
        h = o * jnp.tanh(c)
    return h


def make_params(key, input_dim, hidden_dim):
    """Deterministic synthetic parameters (PyTorch-style uniform init)."""
    k1, k2, k3, k4, k5, k6 = jax.random.split(key, 6)
    D, H = input_dim, hidden_dim
    bound_emb = 1.0 / jnp.sqrt(2.0)
    bound_lstm = 1.0 / jnp.sqrt(float(H))
    # Stored transposed relative to PyTorch (in_features, out_features).
    w_emb = jax.random.uniform(k1, (2, D), jnp.float32, -bound_emb, bound_emb)
    b_emb = jax.random.uniform(k2, (1, D), jnp.float32, -bound_emb, bound_emb)
    w_ih = jax.random.uniform(k3, (D, 4 * H), jnp.float32, -bound_lstm, bound_lstm)
    w_hh = jax.random.uniform(k4, (H, 4 * H), jnp.float32, -bound_lstm, bound_lstm)
    b_ih = jax.random.uniform(k5, (1, 4 * H), jnp.float32, -bound_lstm, bound_lstm)
    b_hh = jax.random.uniform(k6, (1, 4 * H), jnp.float32, -bound_lstm, bound_lstm)
    return {"w_emb": w_emb, "b_emb": b_emb,
            "w_ih": w_ih, "w_hh": w_hh, "b": b_ih + b_hh}


if __name__ == "__main__":
    # Small, forward-implied shapes.
    obs_len = 8          # number of timesteps consumed by the LSTM
    seq = 8              # total trajectory length (>= obs_len)
    batch = 4
    input_dim = 16       # action_encoder_input_dim
    hidden_dim = 32      # action_encoder_hidden_dim  (4H = 128 = one lane width)

    key = jax.random.PRNGKey(0)
    k_traj, k_h, k_c, k_par = jax.random.split(key, 4)

    obs_traj = jax.random.normal(k_traj, (seq, batch, 2), jnp.float32)
    # init_hidden uses torch.randn; we draw deterministic normals instead.
    h0 = jax.random.normal(k_h, (batch, hidden_dim), jnp.float32)
    c0 = jax.random.normal(k_c, (batch, hidden_dim), jnp.float32)
    params = make_params(k_par, input_dim, hidden_dim)

    out = action_encoder_forward(obs_traj, h0, c0, params, obs_len)
    out = jax.block_until_ready(out)

    ref = action_encoder_reference(obs_traj, h0, c0, params, obs_len)
    assert out.shape == (batch, hidden_dim)
    # Slightly relaxed tolerance: sigmoid is computed as 0.5*tanh(x/2)+0.5 and
    # the 8-step recurrence accumulates the tiny per-step rounding difference.
    assert jnp.allclose(out, ref, atol=1e-4, rtol=1e-4), "mismatch vs reference"

    print("KERNEL_OK")
</pallas_src>

<mosaic_0001>
module attributes {stable_mosaic.version = 11 : i64} {
  func.func @action_encoder_kernel(%arg0: memref<64x2xf32, #tpu.memory_space<vmem>>, %arg1: memref<8x32xf32, #tpu.memory_space<vmem>>, %arg2: memref<8x32xf32, #tpu.memory_space<vmem>>, %arg3: memref<2x16xf32, #tpu.memory_space<vmem>>, %arg4: memref<1x16xf32, #tpu.memory_space<vmem>>, %arg5: memref<16x128xf32, #tpu.memory_space<vmem>>, %arg6: memref<32x128xf32, #tpu.memory_space<vmem>>, %arg7: memref<1x128xf32, #tpu.memory_space<vmem>>, %arg8: memref<8x32xf32, #tpu.memory_space<vmem>>) attributes {dimension_semantics = [], scalar_prefetch = 0 : i64, scratch_operands = 0 : i64, tpu.core_type = #tpu.core_type<tc>} {
    %c0 = arith.constant 0 : index
    %c0_0 = arith.constant 0 : index
    %0 = vector.load %arg0[%c0, %c0_0] : memref<64x2xf32, #tpu.memory_space<vmem>>, vector<64x2xf32>
    %c0_1 = arith.constant 0 : index
    %c0_2 = arith.constant 0 : index
    %1 = vector.load %arg3[%c0_1, %c0_2] : memref<2x16xf32, #tpu.memory_space<vmem>>, vector<2x16xf32>
    %2 = vector.extract_strided_slice %0 {offsets = [0, 0], sizes = [64, 1], strides = [1, 1]} : vector<64x2xf32> to vector<64x1xf32>
    %3 = vector.extract_strided_slice %1 {offsets = [0, 0], sizes = [1, 16], strides = [1, 1]} : vector<2x16xf32> to vector<1x16xf32>
    %4 = vector.broadcast %2 : vector<64x1xf32> to vector<64x16xf32>
    %5 = vector.broadcast %3 : vector<1x16xf32> to vector<64x16xf32>
    %6 = arith.mulf %4, %5 : vector<64x16xf32>
    %7 = vector.extract_strided_slice %0 {offsets = [0, 1], sizes = [64, 1], strides = [1, 1]} : vector<64x2xf32> to vector<64x1xf32>
    %8 = vector.extract_strided_slice %1 {offsets = [1, 0], sizes = [1, 16], strides = [1, 1]} : vector<2x16xf32> to vector<1x16xf32>
    %9 = vector.broadcast %7 : vector<64x1xf32> to vector<64x16xf32>
    %10 = vector.broadcast %8 : vector<1x16xf32> to vector<64x16xf32>
    %11 = arith.mulf %9, %10 : vector<64x16xf32>
    %12 = arith.addf %6, %11 : vector<64x16xf32>
    %c0_3 = arith.constant 0 : index
    %c0_4 = arith.constant 0 : index
    %13 = vector.load %arg4[%c0_3, %c0_4] : memref<1x16xf32, #tpu.memory_space<vmem>>, vector<1x16xf32>
    %14 = vector.broadcast %13 : vector<1x16xf32> to vector<64x16xf32>
    %15 = arith.addf %12, %14 : vector<64x16xf32>
    %cst = arith.constant 0.000000e+00 : f32
    %16 = vector.broadcast %cst : f32 to vector<64x16xf32>
    %17 = arith.maximumf %15, %16 : vector<64x16xf32>
    %c0_5 = arith.constant 0 : index
    %c0_6 = arith.constant 0 : index
    %18 = vector.load %arg5[%c0_5, %c0_6] : memref<16x128xf32, #tpu.memory_space<vmem>>, vector<16x128xf32>
    %cst_7 = arith.constant dense<0.000000e+00> : vector<64x128xf32>
    %19 = tpu.matmul %17, %18, %cst_7 {dimension_numbers = #tpu.dot_dimension_numbers<[1], [0], [0], [1], [0, 0, 1, 1], [], []>} : vector<64x16xf32>, vector<16x128xf32>, vector<64x128xf32> -> vector<64x128xf32>
    %c0_8 = arith.constant 0 : index
    %c0_9 = arith.constant 0 : index
    %20 = vector.load %arg7[%c0_8, %c0_9] : memref<1x128xf32, #tpu.memory_space<vmem>>, vector<1x128xf32>
    %21 = vector.broadcast %20 : vector<1x128xf32> to vector<64x128xf32>
    %22 = arith.addf %19, %21 : vector<64x128xf32>
    %c0_10 = arith.constant 0 : index
    %c0_11 = arith.constant 0 : index
    %23 = vector.load %arg6[%c0_10, %c0_11] : memref<32x128xf32, #tpu.memory_space<vmem>>, vector<32x128xf32>
    %c0_12 = arith.constant 0 : index
    %c0_13 = arith.constant 0 : index
    %24 = vector.load %arg1[%c0_12, %c0_13] : memref<8x32xf32, #tpu.memory_space<vmem>>, vector<8x32xf32>
    %c0_14 = arith.constant 0 : index
    %c0_15 = arith.constant 0 : index
    %25 = vector.load %arg2[%c0_14, %c0_15] : memref<8x32xf32, #tpu.memory_space<vmem>>, vector<8x32xf32>
    %26 = vector.extract_strided_slice %22 {offsets = [0, 0], sizes = [8, 128], strides = [1, 1]} : vector<64x128xf32> to vector<8x128xf32>
    %cst_16 = arith.constant dense<0.000000e+00> : vector<8x128xf32>
    %27 = tpu.matmul %24, %23, %cst_16 {dimension_numbers = #tpu.dot_dimension_numbers<[1], [0], [0], [1], [0, 0, 1, 1], [], []>} : vector<8x32xf32>, vector<32x128xf32>, vector<8x128xf32> -> vector<8x128xf32>
    %28 = arith.addf %26, %27 : vector<8x128xf32>
    %29 = math.tanh %28 : vector<8x128xf32>
    %30 = vector.extract_strided_slice %29 {offsets = [0, 0], sizes = [8, 32], strides = [1, 1]} : vector<8x128xf32> to vector<8x32xf32>
    %cst_17 = arith.constant 5.000000e-01 : f32
    %31 = vector.broadcast %cst_17 : f32 to vector<8x32xf32>
    %32 = arith.mulf %31, %30 : vector<8x32xf32>
    %cst_18 = arith.constant 5.000000e-01 : f32
    %33 = vector.broadcast %cst_18 : f32 to vector<8x32xf32>
    %34 = arith.addf %32, %33 : vector<8x32xf32>
    %35 = vector.extract_strided_slice %29 {offsets = [0, 32], sizes = [8, 32], strides = [1, 1]} : vector<8x128xf32> to vector<8x32xf32>
    %cst_19 = arith.constant 5.000000e-01 : f32
    %36 = vector.broadcast %cst_19 : f32 to vector<8x32xf32>
    %37 = arith.mulf %36, %35 : vector<8x32xf32>
    %cst_20 = arith.constant 5.000000e-01 : f32
    %38 = vector.broadcast %cst_20 : f32 to vector<8x32xf32>
    %39 = arith.addf %37, %38 : vector<8x32xf32>
    %40 = vector.extract_strided_slice %29 {offsets = [0, 64], sizes = [8, 32], strides = [1, 1]} : vector<8x128xf32> to vector<8x32xf32>
    %41 = vector.extract_strided_slice %29 {offsets = [0, 96], sizes = [8, 32], strides = [1, 1]} : vector<8x128xf32> to vector<8x32xf32>
    %cst_21 = arith.constant 5.000000e-01 : f32
    %42 = vector.broadcast %cst_21 : f32 to vector<8x32xf32>
    %43 = arith.mulf %42, %41 : vector<8x32xf32>
    %cst_22 = arith.constant 5.000000e-01 : f32
    %44 = vector.broadcast %cst_22 : f32 to vector<8x32xf32>
    %45 = arith.addf %43, %44 : vector<8x32xf32>
    %46 = arith.mulf %39, %25 : vector<8x32xf32>
    %47 = arith.mulf %34, %40 : vector<8x32xf32>
    %48 = arith.addf %46, %47 : vector<8x32xf32>
    %49 = math.tanh %48 : vector<8x32xf32>
    %50 = arith.mulf %45, %49 : vector<8x32xf32>
    %51 = vector.extract_strided_slice %22 {offsets = [8, 0], sizes = [8, 128], strides = [1, 1]} : vector<64x128xf32> to vector<8x128xf32>
    %cst_23 = arith.constant dense<0.000000e+00> : vector<8x128xf32>
    %52 = tpu.matmul %50, %23, %cst_23 {dimension_numbers = #tpu.dot_dimension_numbers<[1], [0], [0], [1], [0, 0, 1, 1], [], []>} : vector<8x32xf32>, vector<32x128xf32>, vector<8x128xf32> -> vector<8x128xf32>
    %53 = arith.addf %51, %52 : vector<8x128xf32>
    %54 = math.tanh %53 : vector<8x128xf32>
    %55 = vector.extract_strided_slice %54 {offsets = [0, 0], sizes = [8, 32], strides = [1, 1]} : vector<8x128xf32> to vector<8x32xf32>
    %cst_24 = arith.constant 5.000000e-01 : f32
    %56 = vector.broadcast %cst_24 : f32 to vector<8x32xf32>
    %57 = arith.mulf %56, %55 : vector<8x32xf32>
    %cst_25 = arith.constant 5.000000e-01 : f32
    %58 = vector.broadcast %cst_25 : f32 to vector<8x32xf32>
    %59 = arith.addf %57, %58 : vector<8x32xf32>
    %60 = vector.extract_strided_slice %54 {offsets = [0, 32], sizes = [8, 32], strides = [1, 1]} : vector<8x128xf32> to vector<8x32xf32>
    %cst_26 = arith.constant 5.000000e-01 : f32
    %61 = vector.broadcast %cst_26 : f32 to vector<8x32xf32>
    %62 = arith.mulf %61, %60 : vector<8x32xf32>
    %cst_27 = arith.constant 5.000000e-01 : f32
    %63 = vector.broadcast %cst_27 : f32 to vector<8x32xf32>
    %64 = arith.addf %62, %63 : vector<8x32xf32>
    %65 = vector.extract_strided_slice %54 {offsets = [0, 64], sizes = [8, 32], strides = [1, 1]} : vector<8x128xf32> to vector<8x32xf32>
    %66 = vector.extract_strided_slice %54 {offsets = [0, 96], sizes = [8, 32], strides = [1, 1]} : vector<8x128xf32> to vector<8x32xf32>
    %cst_28 = arith.constant 5.000000e-01 : f32
    %67 = vector.broadcast %cst_28 : f32 to vector<8x32xf32>
    %68 = arith.mulf %67, %66 : vector<8x32xf32>
    %cst_29 = arith.constant 5.000000e-01 : f32
    %69 = vector.broadcast %cst_29 : f32 to vector<8x32xf32>
    %70 = arith.addf %68, %69 : vector<8x32xf32>
    %71 = arith.mulf %64, %48 : vector<8x32xf32>
    %72 = arith.mulf %59, %65 : vector<8x32xf32>
    %73 = arith.addf %71, %72 : vector<8x32xf32>
    %74 = math.tanh %73 : vector<8x32xf32>
    %75 = arith.mulf %70, %74 : vector<8x32xf32>
    %76 = vector.extract_strided_slice %22 {offsets = [16, 0], sizes = [8, 128], strides = [1, 1]} : vector<64x128xf32> to vector<8x128xf32>
    %cst_30 = arith.constant dense<0.000000e+00> : vector<8x128xf32>
    %77 = tpu.matmul %75, %23, %cst_30 {dimension_numbers = #tpu.dot_dimension_numbers<[1], [0], [0], [1], [0, 0, 1, 1], [], []>} : vector<8x32xf32>, vector<32x128xf32>, vector<8x128xf32> -> vector<8x128xf32>
    %78 = arith.addf %76, %77 : vector<8x128xf32>
    %79 = math.tanh %78 : vector<8x128xf32>
    %80 = vector.extract_strided_slice %79 {offsets = [0, 0], sizes = [8, 32], strides = [1, 1]} : vector<8x128xf32> to vector<8x32xf32>
    %cst_31 = arith.constant 5.000000e-01 : f32
    %81 = vector.broadcast %cst_31 : f32 to vector<8x32xf32>
    %82 = arith.mulf %81, %80 : vector<8x32xf32>
    %cst_32 = arith.constant 5.000000e-01 : f32
    %83 = vector.broadcast %cst_32 : f32 to vector<8x32xf32>
    %84 = arith.addf %82, %83 : vector<8x32xf32>
    %85 = vector.extract_strided_slice %79 {offsets = [0, 32], sizes = [8, 32], strides = [1, 1]} : vector<8x128xf32> to vector<8x32xf32>
    %cst_33 = arith.constant 5.000000e-01 : f32
    %86 = vector.broadcast %cst_33 : f32 to vector<8x32xf32>
    %87 = arith.mulf %86, %85 : vector<8x32xf32>
    %cst_34 = arith.constant 5.000000e-01 : f32
    %88 = vector.broadcast %cst_34 : f32 to vector<8x32xf32>
    %89 = arith.addf %87, %88 : vector<8x32xf32>
    %90 = vector.extract_strided_slice %79 {offsets = [0, 64], sizes = [8, 32], strides = [1, 1]} : vector<8x128xf32> to vector<8x32xf32>
    %91 = vector.extract_strided_slice %79 {offsets = [0, 96], sizes = [8, 32], strides = [1, 1]} : vector<8x128xf32> to vector<8x32xf32>
    %cst_35 = arith.constant 5.000000e-01 : f32
    %92 = vector.broadcast %cst_35 : f32 to vector<8x32xf32>
    %93 = arith.mulf %92, %91 : vector<8x32xf32>
    %cst_36 = arith.constant 5.000000e-01 : f32
    %94 = vector.broadcast %cst_36 : f32 to vector<8x32xf32>
    %95 = arith.addf %93, %94 : vector<8x32xf32>
    %96 = arith.mulf %89, %73 : vector<8x32xf32>
    %97 = arith.mulf %84, %90 : vector<8x32xf32>
    %98 = arith.addf %96, %97 : vector<8x32xf32>
    %99 = math.tanh %98 : vector<8x32xf32>
    %100 = arith.mulf %95, %99 : vector<8x32xf32>
    %101 = vector.extract_strided_slice %22 {offsets = [24, 0], sizes = [8, 128], strides = [1, 1]} : vector<64x128xf32> to vector<8x128xf32>
    %cst_37 = arith.constant dense<0.000000e+00> : vector<8x128xf32>
    %102 = tpu.matmul %100, %23, %cst_37 {dimension_numbers = #tpu.dot_dimension_numbers<[1], [0], [0], [1], [0, 0, 1, 1], [], []>} : vector<8x32xf32>, vector<32x128xf32>, vector<8x128xf32> -> vector<8x128xf32>
    %103 = arith.addf %101, %102 : vector<8x128xf32>
    %104 = math.tanh %103 : vector<8x128xf32>
    %105 = vector.extract_strided_slice %104 {offsets = [0, 0], sizes = [8, 32], strides = [1, 1]} : vector<8x128xf32> to vector<8x32xf32>
    %cst_38 = arith.constant 5.000000e-01 : f32
    %106 = vector.broadcast %cst_38 : f32 to vector<8x32xf32>
    %107 = arith.mulf %106, %105 : vector<8x32xf32>
    %cst_39 = arith.constant 5.000000e-01 : f32
    %108 = vector.broadcast %cst_39 : f32 to vector<8x32xf32>
    %109 = arith.addf %107, %108 : vector<8x32xf32>
    %110 = vector.extract_strided_slice %104 {offsets = [0, 32], sizes = [8, 32], strides = [1, 1]} : vector<8x128xf32> to vector<8x32xf32>
    %cst_40 = arith.constant 5.000000e-01 : f32
    %111 = vector.broadcast %cst_40 : f32 to vector<8x32xf32>
    %112 = arith.mulf %111, %110 : vector<8x32xf32>
    %cst_41 = arith.constant 5.000000e-01 : f32
    %113 = vector.broadcast %cst_41 : f32 to vector<8x32xf32>
    %114 = arith.addf %112, %113 : vector<8x32xf32>
    %115 = vector.extract_strided_slice %104 {offsets = [0, 64], sizes = [8, 32], strides = [1, 1]} : vector<8x128xf32> to vector<8x32xf32>
    %116 = vector.extract_strided_slice %104 {offsets = [0, 96], sizes = [8, 32], strides = [1, 1]} : vector<8x128xf32> to vector<8x32xf32>
    %cst_42 = arith.constant 5.000000e-01 : f32
    %117 = vector.broadcast %cst_42 : f32 to vector<8x32xf32>
    %118 = arith.mulf %117, %116 : vector<8x32xf32>
    %cst_43 = arith.constant 5.000000e-01 : f32
    %119 = vector.broadcast %cst_43 : f32 to vector<8x32xf32>
    %120 = arith.addf %118, %119 : vector<8x32xf32>
    %121 = arith.mulf %114, %98 : vector<8x32xf32>
    %122 = arith.mulf %109, %115 : vector<8x32xf32>
    %123 = arith.addf %121, %122 : vector<8x32xf32>
    %124 = math.tanh %123 : vector<8x32xf32>
    %125 = arith.mulf %120, %124 : vector<8x32xf32>
    %126 = vector.extract_strided_slice %22 {offsets = [32, 0], sizes = [8, 128], strides = [1, 1]} : vector<64x128xf32> to vector<8x128xf32>
    %cst_44 = arith.constant dense<0.000000e+00> : vector<8x128xf32>
    %127 = tpu.matmul %125, %23, %cst_44 {dimension_numbers = #tpu.dot_dimension_numbers<[1], [0], [0], [1], [0, 0, 1, 1], [], []>} : vector<8x32xf32>, vector<32x128xf32>, vector<8x128xf32> -> vector<8x128xf32>
    %128 = arith.addf %126, %127 : vector<8x128xf32>
    %129 = math.tanh %128 : vector<8x128xf32>
    %130 = vector.extract_strided_slice %129 {offsets = [0, 0], sizes = [8, 32], strides = [1, 1]} : vector<8x128xf32> to vector<8x32xf32>
    %cst_45 = arith.constant 5.000000e-01 : f32
    %131 = vector.broadcast %cst_45 : f32 to vector<8x32xf32>
    %132 = arith.mulf %131, %130 : vector<8x32xf32>
    %cst_46 = arith.constant 5.000000e-01 : f32
    %133 = vector.broadcast %cst_46 : f32 to vector<8x32xf32>
    %134 = arith.addf %132, %133 : vector<8x32xf32>
    %135 = vector.extract_strided_slice %129 {offsets = [0, 32], sizes = [8, 32], strides = [1, 1]} : vector<8x128xf32> to vector<8x32xf32>
    %cst_47 = arith.constant 5.000000e-01 : f32
    %136 = vector.broadcast %cst_47 : f32 to vector<8x32xf32>
    %137 = arith.mulf %136, %135 : vector<8x32xf32>
    %cst_48 = arith.constant 5.000000e-01 : f32
    %138 = vector.broadcast %cst_48 : f32 to vector<8x32xf32>
    %139 = arith.addf %137, %138 : vector<8x32xf32>
    %140 = vector.extract_strided_slice %129 {offsets = [0, 64], sizes = [8, 32], strides = [1, 1]} : vector<8x128xf32> to vector<8x32xf32>
    %141 = vector.extract_strided_slice %129 {offsets = [0, 96], sizes = [8, 32], strides = [1, 1]} : vector<8x128xf32> to vector<8x32xf32>
    %cst_49 = arith.constant 5.000000e-01 : f32
    %142 = vector.broadcast %cst_49 : f32 to vector<8x32xf32>
    %143 = arith.mulf %142, %141 : vector<8x32xf32>
    %cst_50 = arith.constant 5.000000e-01 : f32
    %144 = vector.broadcast %cst_50 : f32 to vector<8x32xf32>
    %145 = arith.addf %143, %144 : vector<8x32xf32>
    %146 = arith.mulf %139, %123 : vector<8x32xf32>
    %147 = arith.mulf %134, %140 : vector<8x32xf32>
    %148 = arith.addf %146, %147 : vector<8x32xf32>
    %149 = math.tanh %148 : vector<8x32xf32>
    %150 = arith.mulf %145, %149 : vector<8x32xf32>
    %151 = vector.extract_strided_slice %22 {offsets = [40, 0], sizes = [8, 128], strides = [1, 1]} : vector<64x128xf32> to vector<8x128xf32>
    %cst_51 = arith.constant dense<0.000000e+00> : vector<8x128xf32>
    %152 = tpu.matmul %150, %23, %cst_51 {dimension_numbers = #tpu.dot_dimension_numbers<[1], [0], [0], [1], [0, 0, 1, 1], [], []>} : vector<8x32xf32>, vector<32x128xf32>, vector<8x128xf32> -> vector<8x128xf32>
    %153 = arith.addf %151, %152 : vector<8x128xf32>
    %154 = math.tanh %153 : vector<8x128xf32>
    %155 = vector.extract_strided_slice %154 {offsets = [0, 0], sizes = [8, 32], strides = [1, 1]} : vector<8x128xf32> to vector<8x32xf32>
    %cst_52 = arith.constant 5.000000e-01 : f32
    %156 = vector.broadcast %cst_52 : f32 to vector<8x32xf32>
    %157 = arith.mulf %156, %155 : vector<8x32xf32>
    %cst_53 = arith.constant 5.000000e-01 : f32
    %158 = vector.broadcast %cst_53 : f32 to vector<8x32xf32>
    %159 = arith.addf %157, %158 : vector<8x32xf32>
    %160 = vector.extract_strided_slice %154 {offsets = [0, 32], sizes = [8, 32], strides = [1, 1]} : vector<8x128xf32> to vector<8x32xf32>
    %cst_54 = arith.constant 5.000000e-01 : f32
    %161 = vector.broadcast %cst_54 : f32 to vector<8x32xf32>
    %162 = arith.mulf %161, %160 : vector<8x32xf32>
    %cst_55 = arith.constant 5.000000e-01 : f32
    %163 = vector.broadcast %cst_55 : f32 to vector<8x32xf32>
    %164 = arith.addf %162, %163 : vector<8x32xf32>
    %165 = vector.extract_strided_slice %154 {offsets = [0, 64], sizes = [8, 32], strides = [1, 1]} : vector<8x128xf32> to vector<8x32xf32>
    %166 = vector.extract_strided_slice %154 {offsets = [0, 96], sizes = [8, 32], strides = [1, 1]} : vector<8x128xf32> to vector<8x32xf32>
    %cst_56 = arith.constant 5.000000e-01 : f32
    %167 = vector.broadcast %cst_56 : f32 to vector<8x32xf32>
    %168 = arith.mulf %167, %166 : vector<8x32xf32>
    %cst_57 = arith.constant 5.000000e-01 : f32
    %169 = vector.broadcast %cst_57 : f32 to vector<8x32xf32>
    %170 = arith.addf %168, %169 : vector<8x32xf32>
    %171 = arith.mulf %164, %148 : vector<8x32xf32>
    %172 = arith.mulf %159, %165 : vector<8x32xf32>
    %173 = arith.addf %171, %172 : vector<8x32xf32>
    %174 = math.tanh %173 : vector<8x32xf32>
    %175 = arith.mulf %170, %174 : vector<8x32xf32>
    %176 = vector.extract_strided_slice %22 {offsets = [48, 0], sizes = [8, 128], strides = [1, 1]} : vector<64x128xf32> to vector<8x128xf32>
    %cst_58 = arith.constant dense<0.000000e+00> : vector<8x128xf32>
    %177 = tpu.matmul %175, %23, %cst_58 {dimension_numbers = #tpu.dot_dimension_numbers<[1], [0], [0], [1], [0, 0, 1, 1], [], []>} : vector<8x32xf32>, vector<32x128xf32>, vector<8x128xf32> -> vector<8x128xf32>
    %178 = arith.addf %176, %177 : vector<8x128xf32>
    %179 = math.tanh %178 : vector<8x128xf32>
    %180 = vector.extract_strided_slice %179 {offsets = [0, 0], sizes = [8, 32], strides = [1, 1]} : vector<8x128xf32> to vector<8x32xf32>
    %cst_59 = arith.constant 5.000000e-01 : f32
    %181 = vector.broadcast %cst_59 : f32 to vector<8x32xf32>
    %182 = arith.mulf %181, %180 : vector<8x32xf32>
    %cst_60 = arith.constant 5.000000e-01 : f32
    %183 = vector.broadcast %cst_60 : f32 to vector<8x32xf32>
    %184 = arith.addf %182, %183 : vector<8x32xf32>
    %185 = vector.extract_strided_slice %179 {offsets = [0, 32], sizes = [8, 32], strides = [1, 1]} : vector<8x128xf32> to vector<8x32xf32>
    %cst_61 = arith.constant 5.000000e-01 : f32
    %186 = vector.broadcast %cst_61 : f32 to vector<8x32xf32>
    %187 = arith.mulf %186, %185 : vector<8x32xf32>
    %cst_62 = arith.constant 5.000000e-01 : f32
    %188 = vector.broadcast %cst_62 : f32 to vector<8x32xf32>
    %189 = arith.addf %187, %188 : vector<8x32xf32>
    %190 = vector.extract_strided_slice %179 {offsets = [0, 64], sizes = [8, 32], strides = [1, 1]} : vector<8x128xf32> to vector<8x32xf32>
    %191 = vector.extract_strided_slice %179 {offsets = [0, 96], sizes = [8, 32], strides = [1, 1]} : vector<8x128xf32> to vector<8x32xf32>
    %cst_63 = arith.constant 5.000000e-01 : f32
    %192 = vector.broadcast %cst_63 : f32 to vector<8x32xf32>
    %193 = arith.mulf %192, %191 : vector<8x32xf32>
    %cst_64 = arith.constant 5.000000e-01 : f32
    %194 = vector.broadcast %cst_64 : f32 to vector<8x32xf32>
    %195 = arith.addf %193, %194 : vector<8x32xf32>
    %196 = arith.mulf %189, %173 : vector<8x32xf32>
    %197 = arith.mulf %184, %190 : vector<8x32xf32>
    %198 = arith.addf %196, %197 : vector<8x32xf32>
    %199 = math.tanh %198 : vector<8x32xf32>
    %200 = arith.mulf %195, %199 : vector<8x32xf32>
    %201 = vector.extract_strided_slice %22 {offsets = [56, 0], sizes = [8, 128], strides = [1, 1]} : vector<64x128xf32> to vector<8x128xf32>
    %cst_65 = arith.constant dense<0.000000e+00> : vector<8x128xf32>
    %202 = tpu.matmul %200, %23, %cst_65 {dimension_numbers = #tpu.dot_dimension_numbers<[1], [0], [0], [1], [0, 0, 1, 1], [], []>} : vector<8x32xf32>, vector<32x128xf32>, vector<8x128xf32> -> vector<8x128xf32>
    %203 = arith.addf %201, %202 : vector<8x128xf32>
    %204 = math.tanh %203 : vector<8x128xf32>
    %205 = vector.extract_strided_slice %204 {offsets = [0, 0], sizes = [8, 32], strides = [1, 1]} : vector<8x128xf32> to vector<8x32xf32>
    %cst_66 = arith.constant 5.000000e-01 : f32
    %206 = vector.broadcast %cst_66 : f32 to vector<8x32xf32>
    %207 = arith.mulf %206, %205 : vector<8x32xf32>
    %cst_67 = arith.constant 5.000000e-01 : f32
    %208 = vector.broadcast %cst_67 : f32 to vector<8x32xf32>
    %209 = arith.addf %207, %208 : vector<8x32xf32>
    %210 = vector.extract_strided_slice %204 {offsets = [0, 32], sizes = [8, 32], strides = [1, 1]} : vector<8x128xf32> to vector<8x32xf32>
    %cst_68 = arith.constant 5.000000e-01 : f32
    %211 = vector.broadcast %cst_68 : f32 to vector<8x32xf32>
    %212 = arith.mulf %211, %210 : vector<8x32xf32>
    %cst_69 = arith.constant 5.000000e-01 : f32
    %213 = vector.broadcast %cst_69 : f32 to vector<8x32xf32>
    %214 = arith.addf %212, %213 : vector<8x32xf32>
    %215 = vector.extract_strided_slice %204 {offsets = [0, 64], sizes = [8, 32], strides = [1, 1]} : vector<8x128xf32> to vector<8x32xf32>
    %216 = vector.extract_strided_slice %204 {offsets = [0, 96], sizes = [8, 32], strides = [1, 1]} : vector<8x128xf32> to vector<8x32xf32>
    %cst_70 = arith.constant 5.000000e-01 : f32
    %217 = vector.broadcast %cst_70 : f32 to vector<8x32xf32>
    %218 = arith.mulf %217, %216 : vector<8x32xf32>
    %cst_71 = arith.constant 5.000000e-01 : f32
    %219 = vector.broadcast %cst_71 : f32 to vector<8x32xf32>
    %220 = arith.addf %218, %219 : vector<8x32xf32>
    %221 = arith.mulf %214, %198 : vector<8x32xf32>
    %222 = arith.mulf %209, %215 : vector<8x32xf32>
    %223 = arith.addf %221, %222 : vector<8x32xf32>
    %224 = math.tanh %223 : vector<8x32xf32>
    %225 = arith.mulf %220, %224 : vector<8x32xf32>
    %c0_72 = arith.constant 0 : index
    %c0_73 = arith.constant 0 : index
    %226 = vector.load %arg8[%c0_72, %c0_73] : memref<8x32xf32, #tpu.memory_space<vmem>>, vector<8x32xf32>
    tpu.vector_store %arg8[%c0_72, %c0_73], %225 {strides = array<i32>} : memref<8x32xf32, #tpu.memory_space<vmem>>, vector<8x32xf32>,
    return
  }
}

</mosaic_0001>

<llo_original>
// kernel: tpu_custom_call.1
$region0: #{tpu_custom_call.1}
  #allocation0 [shape = 'u32[]', space=smem, size = 0x4, offset = 0x4, fixed_abs, tag = 'smem constant byte address 0x4 - core index']
  #allocation1 [shape = 'u32[144,128]{1,0:T(1,128)}', space=vmem, size = 0x12000, scoped, tag = 'internal scratch']
  %s0 = inlined_call_operand.vmem [shape: f32[64,2], index: 0, kind: input, shape index: {}]
  %s1 = inlined_call_operand.vmem [shape: f32[8,32], index: 1, kind: input, shape index: {}]
  %s2 = inlined_call_operand.vmem [shape: f32[8,32], index: 2, kind: input, shape index: {}]
  %s3 = inlined_call_operand.vmem [shape: f32[2,16], index: 3, kind: input, shape index: {}]
  %s4 = inlined_call_operand.vmem [shape: f32[1,16], index: 4, kind: input, shape index: {}]
  %s5 = inlined_call_operand.vmem [shape: f32[16,128], index: 5, kind: input, shape index: {}]
  %s6 = inlined_call_operand.vmem [shape: f32[32,128], index: 6, kind: input, shape index: {}]
  %s7 = inlined_call_operand.vmem [shape: f32[1,128], index: 7, kind: input, shape index: {}]
  %s8 = inlined_call_operand.hbm [shape: f32[8,32], index: 8, kind: output, shape index: {}]
  %s9 = sld [smem:[#allocation0]]
  $region42: #{tpu_custom_call.1} parent=0
    _
  %s11 = ssub.s32 1, %s9
  %s12 = scalar_select 0, %s11, %s9
  $region1: #{tpu_custom_call.1} parent=0
    #allocation2 [shape = 'u8[4096]{0}', space=vmem, size = 0x1000, scoped, tag = 'output window, operand 0, single buffered']
    #allocation3 [shape = 's32[1]{0}', space=sflag, size = 0x4, scoped, tag = 'scoped memory for tpu_custom_call.1']
    %13 = vsyncpa [#allocation3], 0
    // Predicated region
    $region2: #{tpu_custom_call.1} parent=1 // pred_check
      _
    $region3: #{tpu_custom_call.1} parent=1 // pred_check_branch
      %15 = sbr.rel (0) target = $region5
    $region4: #{tpu_custom_call.1} parent=1 // pred_region
      _
    $region5: #{tpu_custom_call.1} parent=1 // pred_fallthru
      _
    // Predicated region
    $region6: #{tpu_custom_call.1} parent=1 // pred_check
      _
    $region7: #{tpu_custom_call.1} parent=1 // pred_check_branch
      %17 = sbr.rel (0) target = $region9
    $region8: #{tpu_custom_call.1} parent=1 // pred_region
      _
    $region9: #{tpu_custom_call.1} parent=1 // pred_fallthru
      _
    // Predicated region
    $region10: #{tpu_custom_call.1} parent=1 // pred_check
      _
    $region11: #{tpu_custom_call.1} parent=1 // pred_check_branch
      %19 = sbr.rel (0) target = $region13
    $region12: #{tpu_custom_call.1} parent=1 // pred_region
      _
    $region13: #{tpu_custom_call.1} parent=1 // pred_fallthru
      _
    // Predicated region
    $region14: #{tpu_custom_call.1} parent=1 // pred_check
      _
    $region15: #{tpu_custom_call.1} parent=1 // pred_check_branch
      %21 = sbr.rel (0) target = $region17
    $region16: #{tpu_custom_call.1} parent=1 // pred_region
      _
    $region17: #{tpu_custom_call.1} parent=1 // pred_fallthru
      _
    // Predicated region
    $region18: #{tpu_custom_call.1} parent=1 // pred_check
      _
    $region19: #{tpu_custom_call.1} parent=1 // pred_check_branch
      %23 = sbr.rel (0) target = $region21
    $region20: #{tpu_custom_call.1} parent=1 // pred_region
      _
    $region21: #{tpu_custom_call.1} parent=1 // pred_fallthru
      _
    // Predicated region
    $region22: #{tpu_custom_call.1} parent=1 // pred_check
      _
    $region23: #{tpu_custom_call.1} parent=1 // pred_check_branch
      %25 = sbr.rel (0) target = $region25
    $region24: #{tpu_custom_call.1} parent=1 // pred_region
      _
    $region25: #{tpu_custom_call.1} parent=1 // pred_fallthru
      _
    // Predicated region
    $region26: #{tpu_custom_call.1} parent=1 // pred_check
      _
    $region27: #{tpu_custom_call.1} parent=1 // pred_check_branch
      %27 = sbr.rel (0) target = $region29
    $region28: #{tpu_custom_call.1} parent=1 // pred_region
      _
    $region29: #{tpu_custom_call.1} parent=1 // pred_fallthru
      _
    // Predicated region
    $region30: #{tpu_custom_call.1} parent=1 // pred_check
      _
    $region31: #{tpu_custom_call.1} parent=1 // pred_check_branch
      %29 = sbr.rel (0) target = $region33
    $region32: #{tpu_custom_call.1} parent=1 // pred_region
      _
    $region33: #{tpu_custom_call.1} parent=1 // pred_fallthru
      _
    %v30 = vld [vmem:[%s0] sm:$0xff]
    %v31 = vld [vmem:[%s0 + $0x8] sm:$0xff]
    %v32 = vld [vmem:[%s0 + $0x10] sm:$0xff]
    %v33 = vld [vmem:[%s0 + $0x18] sm:$0xff]
    %v34 = vld [vmem:[%s0 + $0x20] sm:$0xff]
    %v35 = vld [vmem:[%s0 + $0x28] sm:$0xff]
    %v36 = vld [vmem:[%s0 + $0x30] sm:$0xff]
    %v37 = vld [vmem:[%s0 + $0x38] sm:$0xff]
    %v38 = vld [vmem:[%s3] sm:$0x3]
    %40 = vset.pattern.permute.xlu0 0
    %41 = vperm.xlu0 %40, %v30
    %v42 = vpop.permute.xlu0 %41
    %45 = vset.pattern.permute.xlu0 0
    %46 = vperm.xlu0 %45, %v31
    %v47 = vpop.permute.xlu0 %46
    %50 = vset.pattern.permute.xlu0 0
    %51 = vperm.xlu0 %50, %v32
    %v52 = vpop.permute.xlu0 %51
    %55 = vset.pattern.permute.xlu0 0
    %56 = vperm.xlu0 %55, %v33
    %v57 = vpop.permute.xlu0 %56
    %60 = vset.pattern.permute.xlu0 0
    %61 = vperm.xlu0 %60, %v34
    %v62 = vpop.permute.xlu0 %61
    %65 = vset.pattern.permute.xlu0 0
    %66 = vperm.xlu0 %65, %v35
    %v67 = vpop.permute.xlu0 %66
    %70 = vset.pattern.permute.xlu0 0
    %71 = vperm.xlu0 %70, %v36
    %v72 = vpop.permute.xlu0 %71
    %75 = vset.pattern.permute.xlu0 0
    %76 = vperm.xlu0 %75, %v37
    %v77 = vpop.permute.xlu0 %76
    %v79 = vlaneseq
    %v80 = vshrl.u32 %v79, 7
    %v81 = vsub.s32 0, %v80
    %v82 = vrot.slane %v38, %v81
    %v83 = vmul.f32 %v42, %v82
    %v84 = vmul.f32 %v47, %v82
    %v85 = vmul.f32 %v52, %v82
    %v86 = vmul.f32 %v57, %v82
    %v87 = vmul.f32 %v62, %v82
    %v88 = vmul.f32 %v67, %v82
    %v89 = vmul.f32 %v72, %v82
    %v90 = vmul.f32 %v77, %v82
    %91 = vset.pattern.permute.xlu0 1
    %92 = vperm.xlu0 %91, %v30
    %v93 = vpop.permute.xlu0 %92
    %95 = vset.pattern.permute.xlu0 1
    %96 = vperm.xlu0 %95, %v31
    %v97 = vpop.permute.xlu0 %96
    %99 = vset.pattern.permute.xlu0 1
    %100 = vperm.xlu0 %99, %v32
    %v101 = vpop.permute.xlu0 %100
    %103 = vset.pattern.permute.xlu0 1
    %104 = vperm.xlu0 %103, %v33
    %v105 = vpop.permute.xlu0 %104
    %107 = vset.pattern.permute.xlu0 1
    %108 = vperm.xlu0 %107, %v34
    %v109 = vpop.permute.xlu0 %108
    %111 = vset.pattern.permute.xlu0 1
    %112 = vperm.xlu0 %111, %v35
    %v113 = vpop.permute.xlu0 %112
    %115 = vset.pattern.permute.xlu0 1
    %116 = vperm.xlu0 %115, %v36
    %v117 = vpop.permute.xlu0 %116
    %119 = vset.pattern.permute.xlu0 1
    %120 = vperm.xlu0 %119, %v37
    %v121 = vpop.permute.xlu0 %120
    %v123 = vlaneseq
    %v124 = vshrl.u32 %v123, 7
    %v125 = vsub.s32 1, %v124
    %v126 = vrot.slane %v38, %v125
    %v127 = vmul.f32 %v93, %v126
    %v128 = vmul.f32 %v97, %v126
    %v129 = vmul.f32 %v101, %v126
    %v130 = vmul.f32 %v105, %v126
    %v131 = vmul.f32 %v109, %v126
    %v132 = vmul.f32 %v113, %v126
    %v133 = vmul.f32 %v117, %v126
    %v134 = vmul.f32 %v121, %v126
    %v135 = vadd.f32 %v83, %v127
    %v136 = vadd.f32 %v84, %v128
    %v137 = vadd.f32 %v85, %v129
    %v138 = vadd.f32 %v86, %v130
    %v139 = vadd.f32 %v87, %v131
    %v140 = vadd.f32 %v88, %v132
    %v141 = vadd.f32 %v89, %v133
    %v142 = vadd.f32 %v90, %v134
    %v143 = vld [vmem:[%s4] sm:$0x1]
    %v145 = vlaneseq
    %v146 = vshrl.u32 %v145, 7
    %v147 = vsub.s32 0, %v146
    %v148 = vrot.slane %v143, %v147
    %v150 = vadd.f32 %v135, %v148
    %v151 = vadd.f32 %v136, %v148
    %v152 = vadd.f32 %v137, %v148
    %v153 = vadd.f32 %v138, %v148
    %v154 = vadd.f32 %v139, %v148
    %v155 = vadd.f32 %v140, %v148
    %v156 = vadd.f32 %v141, %v148
    %v157 = vadd.f32 %v142, %v148
    %v158 = vmax.f32 %v150, 0.0
    %v159 = vmax.f32 %v151, 0.0
    %v160 = vmax.f32 %v152, 0.0
    %v161 = vmax.f32 %v153, 0.0
    %v162 = vmax.f32 %v154, 0.0
    %v163 = vmax.f32 %v155, 0.0
    %v164 = vmax.f32 %v156, 0.0
    %v165 = vmax.f32 %v157, 0.0
    %v166 = vld [vmem:[%s5] sm:$0xff]
    %v167 = vld [vmem:[%s5 + $0x8] sm:$0xff]
    %v168 = vld [vmem:[%s7] sm:$0x1]
    %v170 = vlaneseq
    %v171 = vshrl.u32 %v170, 7
    %v172 = vsub.s32 0, %v171
    %v173 = vrot.slane %v168, %v172
    %vm175 = vcmask 130048
    %v177 = vsel %vm175, %v158, 0
    %v180 = vsel %vm175, %v159, 0
    %v183 = vsel %vm175, %v160, 0
    %v186 = vsel %vm175, %v161, 0
    %v189 = vsel %vm175, %v162, 0
    %v192 = vsel %vm175, %v163, 0
    %v195 = vsel %vm175, %v164, 0
    %v198 = vsel %vm175, %v165, 0
    %200 = vmatprep.subr.mxu0 0.0
    %201 = vmatpush1.msra.mxu0 %v166
    %202 = vmatprep.subr.mxu0 0.0
    %203 = vmatpush1.msra.mxu0 %v167
    %204 = vmatprep.subr.mxu0 0.0
    %205 = vmatpush1.msra.mxu0 0.0
    %206 = vmatprep.subr.mxu0 0.0
    %207 = vmatpush1.msra.mxu0 0.0
    %208 = vmatprep.subr.mxu0 0.0
    %209 = vmatpush1.msra.mxu0 0.0
    %210 = vmatprep.subr.mxu0 0.0
    %211 = vmatpush1.msra.mxu0 0.0
    %212 = vmatprep.subr.mxu0 0.0
    %213 = vmatpush1.msra.mxu0 0.0
    %214 = vmatprep.subr.mxu0 0.0
    %215 = vmatpush1.msra.mxu0 0.0
    %216 = vmatprep.subr.mxu0 0.0
    %217 = vmatpush1.msra.mxu0 0.0
    %218 = vmatprep.subr.mxu0 0.0
    %219 = vmatpush1.msra.mxu0 0.0
    %220 = vmatprep.subr.mxu0 0.0
    %221 = vmatpush1.msra.mxu0 0.0
    %222 = vmatprep.subr.mxu0 0.0
    %223 = vmatpush1.msra.mxu0 0.0
    %224 = vmatprep.subr.mxu0 0.0
    %225 = vmatpush1.msra.mxu0 0.0
    %226 = vmatprep.subr.mxu0 0.0
    %227 = vmatpush1.msra.mxu0 0.0
    %228 = vmatprep.subr.mxu0 0.0
    %229 = vmatpush1.msra.mxu0 0.0
    %230 = vmatprep.subr.mxu0 0.0
    %231 = vmatpush1.msra.mxu0 0.0
    %232 = vmatprep.subr.mxu0 0.0
    %233 = vmatpush1.msra.mxu0 0.0
    %234 = vmatprep.subr.mxu0 0.0
    %235 = vmatpush1.msra.mxu0 0.0
    %236 = vmatprep.subr.mxu0 0.0
    %237 = vmatpush1.msra.mxu0 0.0
    %238 = vmatprep.subr.mxu0 0.0
    %239 = vmatpush1.msra.mxu0 0.0
    %240 = vmatprep.subr.mxu0 0.0
    %241 = vmatpush1.msra.mxu0 0.0
    %242 = vmatprep.subr.mxu0 0.0
    %243 = vmatpush1.msra.mxu0 0.0
    %244 = vmatprep.subr.mxu0 0.0
    %245 = vmatpush1.msra.mxu0 0.0
    %246 = vmatprep.subr.mxu0 0.0
    %247 = vmatpush1.msra.mxu0 0.0
    %248 = vmatprep.subr.mxu0 0.0
    %249 = vmatpush1.msra.mxu0 0.0
    %250 = vmatprep.subr.mxu0 0.0
    %251 = vmatpush1.msra.mxu0 0.0
    %252 = vmatprep.subr.mxu0 0.0
    %253 = vmatpush1.msra.mxu0 0.0
    %254 = vmatprep.subr.mxu0 0.0
    %255 = vmatpush1.msra.mxu0 0.0
    %256 = vmatprep.subr.mxu0 0.0
    %257 = vmatpush1.msra.mxu0 0.0
    %258 = vmatprep.subr.mxu0 0.0
    %259 = vmatpush1.msra.mxu0 0.0
    %260 = vmatprep.subr.mxu0 0.0
    %261 = vmatpush1.msra.mxu0 0.0
    %262 = vmatprep.subr.mxu0 0.0
    %263 = vmatpush1.msra.mxu0 0.0
    %264 = vmatprep.mubr.f32.mxu0 0.0
    %265 = vmatmul.mubr.f32.gmra.mrb[0].mxu0 %v177
    %v266 = vpop.f32.mrb[0].mxu0
    %v267 = vadd.f32 %v173, %v266
    %v268 = vpop.f32.mrb[0].mxu0
    %269 = vmatprep.mubr.f32.mxu0 0.0
    %270 = vmatmul.mubr.f32.gmra.mrb[0].mxu0 %v180
    %v271 = vpop.f32.mrb[0].mxu0
    %v272 = vadd.f32 %v173, %v271
    %v273 = vpop.f32.mrb[0].mxu0
    %274 = vmatprep.mubr.f32.mxu0 0.0
    %275 = vmatmul.mubr.f32.gmra.mrb[0].mxu0 %v183
    %v276 = vpop.f32.mrb[0].mxu0
    %v277 = vadd.f32 %v173, %v276
    %v278 = vpop.f32.mrb[0].mxu0
    %279 = vmatprep.mubr.f32.mxu0 0.0
    %280 = vmatmul.mubr.f32.gmra.mrb[0].mxu0 %v186
    %v281 = vpop.f32.mrb[0].mxu0
    %v282 = vadd.f32 %v173, %v281
    %v283 = vpop.f32.mrb[0].mxu0
    %284 = vmatprep.mubr.f32.mxu0 0.0
    %285 = vmatmul.mubr.f32.gmra.mrb[0].mxu0 %v189
    %v286 = vpop.f32.mrb[0].mxu0
    %v287 = vadd.f32 %v173, %v286
    %v288 = vpop.f32.mrb[0].mxu0
    %289 = vmatprep.mubr.f32.mxu0 0.0
    %290 = vmatmul.mubr.f32.gmra.mrb[0].mxu0 %v192
    %v291 = vpop.f32.mrb[0].mxu0
    %v292 = vadd.f32 %v173, %v291
    %v293 = vpop.f32.mrb[0].mxu0
    %294 = vmatprep.mubr.f32.mxu0 0.0
    %295 = vmatmul.mubr.f32.gmra.mrb[0].mxu0 %v195
    %v296 = vpop.f32.mrb[0].mxu0
    %v297 = vadd.f32 %v173, %v296
    %v298 = vpop.f32.mrb[0].mxu0
    %299 = vmatprep.mubr.f32.mxu0 0.0
    %300 = vmatmul.mubr.f32.gmra.mrb[0].mxu0 %v198
    %v301 = vpop.f32.mrb[0].mxu0
    %v302 = vadd.f32 %v173, %v301
    %v303 = vpop.f32.mrb[0].mxu0
    %304 = vdwg.mxu0
    %v305 = vld [vmem:[%s6] sm:$0xff]
    %v306 = vld [vmem:[%s6 + $0x8] sm:$0xff]
    %v307 = vld [vmem:[%s6 + $0x10] sm:$0xff]
    %v308 = vld [vmem:[%s6 + $0x18] sm:$0xff]
    %v309 = vld [vmem:[%s1] sm:$0xff]
    %v310 = vld [vmem:[%s2] sm:$0xff]
    %vm311 = vcmask 261120
    %v313 = vsel %vm311, %v309, 0
    %315 = vmatprep.subr.mxu0 0.0
    %316 = vmatpush1.msra.mxu0 %v305
    %317 = vmatprep.subr.mxu0 0.0
    %318 = vmatpush1.msra.mxu0 %v306
    %319 = vmatprep.subr.mxu0 0.0
    %320 = vmatpush1.msra.mxu0 %v307
    %321 = vmatprep.subr.mxu0 0.0
    %322 = vmatpush1.msra.mxu0 %v308
    %323 = vmatprep.subr.mxu0 0.0
    %324 = vmatpush1.msra.mxu0 0.0
    %325 = vmatprep.subr.mxu0 0.0
    %326 = vmatpush1.msra.mxu0 0.0
    %327 = vmatprep.subr.mxu0 0.0
    %328 = vmatpush1.msra.mxu0 0.0
    %329 = vmatprep.subr.mxu0 0.0
    %330 = vmatpush1.msra.mxu0 0.0
    %331 = vmatprep.subr.mxu0 0.0
    %332 = vmatpush1.msra.mxu0 0.0
    %333 = vmatprep.subr.mxu0 0.0
    %334 = vmatpush1.msra.mxu0 0.0
    %335 = vmatprep.subr.mxu0 0.0
    %336 = vmatpush1.msra.mxu0 0.0
    %337 = vmatprep.subr.mxu0 0.0
    %338 = vmatpush1.msra.mxu0 0.0
    %339 = vmatprep.subr.mxu0 0.0
    %340 = vmatpush1.msra.mxu0 0.0
    %341 = vmatprep.subr.mxu0 0.0
    %342 = vmatpush1.msra.mxu0 0.0
    %343 = vmatprep.subr.mxu0 0.0
    %344 = vmatpush1.msra.mxu0 0.0
    %345 = vmatprep.subr.mxu0 0.0
    %346 = vmatpush1.msra.mxu0 0.0
    %347 = vmatprep.subr.mxu0 0.0
    %348 = vmatpush1.msra.mxu0 0.0
    %349 = vmatprep.subr.mxu0 0.0
    %350 = vmatpush1.msra.mxu0 0.0
    %351 = vmatprep.subr.mxu0 0.0
    %352 = vmatpush1.msra.mxu0 0.0
    %353 = vmatprep.subr.mxu0 0.0
    %354 = vmatpush1.msra.mxu0 0.0
    %355 = vmatprep.subr.mxu0 0.0
    %356 = vmatpush1.msra.mxu0 0.0
    %357 = vmatprep.subr.mxu0 0.0
    %358 = vmatpush1.msra.mxu0 0.0
    %359 = vmatprep.subr.mxu0 0.0
    %360 = vmatpush1.msra.mxu0 0.0
    %361 = vmatprep.subr.mxu0 0.0
    %362 = vmatpush1.msra.mxu0 0.0
    %363 = vmatprep.subr.mxu0 0.0
    %364 = vmatpush1.msra.mxu0 0.0
    %365 = vmatprep.subr.mxu0 0.0
    %366 = vmatpush1.msra.mxu0 0.0
    %367 = vmatprep.subr.mxu0 0.0
    %368 = vmatpush1.msra.mxu0 0.0
    %369 = vmatprep.subr.mxu0 0.0
    %370 = vmatpush1.msra.mxu0 0.0
    %371 = vmatprep.subr.mxu0 0.0
    %372 = vmatpush1.msra.mxu0 0.0
    %373 = vmatprep.subr.mxu0 0.0
    %374 = vmatpush1.msra.mxu0 0.0
    %375 = vmatprep.subr.mxu0 0.0
    %376 = vmatpush1.msra.mxu0 0.0
    %377 = vmatprep.subr.mxu0 0.0
    %378 = vmatpush1.msra.mxu0 0.0
    %379 = vmatprep.mubr.f32.mxu0 0.0
    %380 = vmatmul.mubr.f32.gmra.mrb[0].mxu0 %v313
    %v381 = vpop.f32.mrb[0].mxu0
    %v382 = vadd.f32 0.0, %v381
    %v383 = vpop.f32.mrb[0].mxu0
    %384 = vdwg.mxu0
    %v385 = vadd.f32 %v267, %v382
    %v386 = vtanh.pop %v385
    %v387 = vmul.f32 %v386, 0.5
    %v388 = vadd.f32 %v387, 0.5
    %390 = vrot.lane.b32.xlu0 %v310, 32
    %v391 = vpop.permute.xlu0 %390
    %v393 = vmul.f32 %v388, %v391
    %395 = vrot.lane.b32.xlu0 %v386, 64
    %v396 = vpop.permute.xlu0 %395
    %v398 = vmul.f32 %v388, %v396
    %400 = vrot.lane.b32.xlu0 %v398, 32
    %v401 = vpop.permute.xlu0 %400
    %v403 = vadd.f32 %v393, %v401
    %v404 = vtanh.pop %v403
    %406 = vrot.lane.b32.xlu0 %v404, 64
    %v407 = vpop.permute.xlu0 %406
    %v409 = vmul.f32 %v388, %v407
    %411 = vrot.lane.b32.xlu0 %v409, 32
    %v412 = vpop.permute.xlu0 %411
    %v413 = vsel %vm311, %v412, 0
    %415 = vmatprep.subr.mxu0 0.0
    %416 = vmatpush1.msra.mxu0 %v305
    %417 = vmatprep.subr.mxu0 0.0
    %418 = vmatpush1.msra.mxu0 %v306
    %419 = vmatprep.subr.mxu0 0.0
    %420 = vmatpush1.msra.mxu0 %v307
    %421 = vmatprep.subr.mxu0 0.0
    %422 = vmatpush1.msra.mxu0 %v308
    %423 = vmatprep.subr.mxu0 0.0
    %424 = vmatpush1.msra.mxu0 0.0
    %425 = vmatprep.subr.mxu0 0.0
    %426 = vmatpush1.msra.mxu0 0.0
    %427 = vmatprep.subr.mxu0 0.0
    %428 = vmatpush1.msra.mxu0 0.0
    %429 = vmatprep.subr.mxu0 0.0
    %430 = vmatpush1.msra.mxu0 0.0
    %431 = vmatprep.subr.mxu0 0.0
    %432 = vmatpush1.msra.mxu0 0.0
    %433 = vmatprep.subr.mxu0 0.0
    %434 = vmatpush1.msra.mxu0 0.0
    %435 = vmatprep.subr.mxu0 0.0
    %436 = vmatpush1.msra.mxu0 0.0
    %437 = vmatprep.subr.mxu0 0.0
    %438 = vmatpush1.msra.mxu0 0.0
    %439 = vmatprep.subr.mxu0 0.0
    %440 = vmatpush1.msra.mxu0 0.0
    %441 = vmatprep.subr.mxu0 0.0
    %442 = vmatpush1.msra.mxu0 0.0
    %443 = vmatprep.subr.mxu0 0.0
    %444 = vmatpush1.msra.mxu0 0.0
    %445 = vmatprep.subr.mxu0 0.0
    %446 = vmatpush1.msra.mxu0 0.0
    %447 = vmatprep.subr.mxu0 0.0
    %448 = vmatpush1.msra.mxu0 0.0
    %449 = vmatprep.subr.mxu0 0.0
    %450 = vmatpush1.msra.mxu0 0.0
    %451 = vmatprep.subr.mxu0 0.0
    %452 = vmatpush1.msra.mxu0 0.0
    %453 = vmatprep.subr.mxu0 0.0
    %454 = vmatpush1.msra.mxu0 0.0
    %455 = vmatprep.subr.mxu0 0.0
    %456 = vmatpush1.msra.mxu0 0.0
    %457 = vmatprep.subr.mxu0 0.0
    %458 = vmatpush1.msra.mxu0 0.0
    %459 = vmatprep.subr.mxu0 0.0
    %460 = vmatpush1.msra.mxu0 0.0
    %461 = vmatprep.subr.mxu0 0.0
    %462 = vmatpush1.msra.mxu0 0.0
    %463 = vmatprep.subr.mxu0 0.0
    %464 = vmatpush1.msra.mxu0 0.0
    %465 = vmatprep.subr.mxu0 0.0
    %466 = vmatpush1.msra.mxu0 0.0
    %467 = vmatprep.subr.mxu0 0.0
    %468 = vmatpush1.msra.mxu0 0.0
    %469 = vmatprep.subr.mxu0 0.0
    %470 = vmatpush1.msra.mxu0 0.0
    %471 = vmatprep.subr.mxu0 0.0
    %472 = vmatpush1.msra.mxu0 0.0
    %473 = vmatprep.subr.mxu0 0.0
    %474 = vmatpush1.msra.mxu0 0.0
    %475 = vmatprep.subr.mxu0 0.0
    %476 = vmatpush1.msra.mxu0 0.0
    %477 = vmatprep.subr.mxu0 0.0
    %478 = vmatpush1.msra.mxu0 0.0
    %479 = vmatprep.mubr.f32.mxu0 0.0
    %480 = vmatmul.mubr.f32.gmra.mrb[0].mxu0 %v413
    %v481 = vpop.f32.mrb[0].mxu0
    %v482 = vadd.f32 0.0, %v481
    %v483 = vpop.f32.mrb[0].mxu0
    %484 = vdwg.mxu0
    %v485 = vadd.f32 %v272, %v482
    %v486 = vtanh.pop %v485
    %v487 = vmul.f32 %v486, 0.5
    %v488 = vadd.f32 %v487, 0.5
    %v489 = vmul.f32 %v488, %v403
    %491 = vrot.lane.b32.xlu0 %v486, 64
    %v492 = vpop.permute.xlu0 %491
    %v494 = vmul.f32 %v488, %v492
    %496 = vrot.lane.b32.xlu0 %v494, 32
    %v497 = vpop.permute.xlu0 %496
    %v499 = vadd.f32 %v489, %v497
    %v500 = vtanh.pop %v499
    %502 = vrot.lane.b32.xlu0 %v500, 64
    %v503 = vpop.permute.xlu0 %502
    %v505 = vmul.f32 %v488, %v503
    %507 = vrot.lane.b32.xlu0 %v505, 32
    %v508 = vpop.permute.xlu0 %507
    %v509 = vsel %vm311, %v508, 0
    %511 = vmatprep.subr.mxu0 0.0
    %512 = vmatpush1.msra.mxu0 %v305
    %513 = vmatprep.subr.mxu0 0.0
    %514 = vmatpush1.msra.mxu0 %v306
    %515 = vmatprep.subr.mxu0 0.0
    %516 = vmatpush1.msra.mxu0 %v307
    %517 = vmatprep.subr.mxu0 0.0
    %518 = vmatpush1.msra.mxu0 %v308
    %519 = vmatprep.subr.mxu0 0.0
    %520 = vmatpush1.msra.mxu0 0.0
    %521 = vmatprep.subr.mxu0 0.0
    %522 = vmatpush1.msra.mxu0 0.0
    %523 = vmatprep.subr.mxu0 0.0
    %524 = vmatpush1.msra.mxu0 0.0
    %525 = vmatprep.subr.mxu0 0.0
    %526 = vmatpush1.msra.mxu0 0.0
    %527 = vmatprep.subr.mxu0 0.0
    %528 = vmatpush1.msra.mxu0 0.0
    %529 = vmatprep.subr.mxu0 0.0
    %530 = vmatpush1.msra.mxu0 0.0
    %531 = vmatprep.subr.mxu0 0.0
    %532 = vmatpush1.msra.mxu0 0.0
    %533 = vmatprep.subr.mxu0 0.0
    %534 = vmatpush1.msra.mxu0 0.0
    %535 = vmatprep.subr.mxu0 0.0
    %536 = vmatpush1.msra.mxu0 0.0
    %537 = vmatprep.subr.mxu0 0.0
    %538 = vmatpush1.msra.mxu0 0.0
    %539 = vmatprep.subr.mxu0 0.0
    %540 = vmatpush1.msra.mxu0 0.0
    %541 = vmatprep.subr.mxu0 0.0
    %542 = vmatpush1.msra.mxu0 0.0
    %543 = vmatprep.subr.mxu0 0.0
    %544 = vmatpush1.msra.mxu0 0.0
    %545 = vmatprep.subr.mxu0 0.0
    %546 = vmatpush1.msra.mxu0 0.0
    %547 = vmatprep.subr.mxu0 0.0
    %548 = vmatpush1.msra.mxu0 0.0
    %549 = vmatprep.subr.mxu0 0.0
    %550 = vmatpush1.msra.mxu0 0.0
    %551 = vmatprep.subr.mxu0 0.0
    %552 = vmatpush1.msra.mxu0 0.0
    %553 = vmatprep.subr.mxu0 0.0
    %554 = vmatpush1.msra.mxu0 0.0
    %555 = vmatprep.subr.mxu0 0.0
    %556 = vmatpush1.msra.mxu0 0.0
    %557 = vmatprep.subr.mxu0 0.0
    %558 = vmatpush1.msra.mxu0 0.0
    %559 = vmatprep.subr.mxu0 0.0
    %560 = vmatpush1.msra.mxu0 0.0
    %561 = vmatprep.subr.mxu0 0.0
    %562 = vmatpush1.msra.mxu0 0.0
    %563 = vmatprep.subr.mxu0 0.0
    %564 = vmatpush1.msra.mxu0 0.0
    %565 = vmatprep.subr.mxu0 0.0
    %566 = vmatpush1.msra.mxu0 0.0
    %567 = vmatprep.subr.mxu0 0.0
    %568 = vmatpush1.msra.mxu0 0.0
    %569 = vmatprep.subr.mxu0 0.0
    %570 = vmatpush1.msra.mxu0 0.0
    %571 = vmatprep.subr.mxu0 0.0
    %572 = vmatpush1.msra.mxu0 0.0
    %573 = vmatprep.subr.mxu0 0.0
    %574 = vmatpush1.msra.mxu0 0.0
    %575 = vmatprep.mubr.f32.mxu0 0.0
    %576 = vmatmul.mubr.f32.gmra.mrb[0].mxu0 %v509
    %v577 = vpop.f32.mrb[0].mxu0
    %v578 = vadd.f32 0.0, %v577
    %v579 = vpop.f32.mrb[0].mxu0
    %580 = vdwg.mxu0
    %v581 = vadd.f32 %v277, %v578
    %v582 = vtanh.pop %v581
    %v583 = vmul.f32 %v582, 0.5
    %v584 = vadd.f32 %v583, 0.5
    %v585 = vmul.f32 %v584, %v499
    %587 = vrot.lane.b32.xlu0 %v582, 64
    %v588 = vpop.permute.xlu0 %587
    %v590 = vmul.f32 %v584, %v588
    %592 = vrot.lane.b32.xlu0 %v590, 32
    %v593 = vpop.permute.xlu0 %592
    %v595 = vadd.f32 %v585, %v593
    %v596 = vtanh.pop %v595
    %598 = vrot.lane.b32.xlu0 %v596, 64
    %v599 = vpop.permute.xlu0 %598
    %v601 = vmul.f32 %v584, %v599
    %603 = vrot.lane.b32.xlu0 %v601, 32
    %v604 = vpop.permute.xlu0 %603
    %v605 = vsel %vm311, %v604, 0
    %607 = vmatprep.subr.mxu0 0.0
    %608 = vmatpush1.msra.mxu0 %v305
    %609 = vmatprep.subr.mxu0 0.0
    %610 = vmatpush1.msra.mxu0 %v306
    %611 = vmatprep.subr.mxu0 0.0
    %612 = vmatpush1.msra.mxu0 %v307
    %613 = vmatprep.subr.mxu0 0.0
    %614 = vmatpush1.msra.mxu0 %v308
    %615 = vmatprep.subr.mxu0 0.0
    %616 = vmatpush1.msra.mxu0 0.0
    %617 = vmatprep.subr.mxu0 0.0
    %618 = vmatpush1.msra.mxu0 0.0
    %619 = vmatprep.subr.mxu0 0.0
    %620 = vmatpush1.msra.mxu0 0.0
    %621 = vmatprep.subr.mxu0 0.0
    %622 = vmatpush1.msra.mxu0 0.0
    %623 = vmatprep.subr.mxu0 0.0
    %624 = vmatpush1.msra.mxu0 0.0
    %625 = vmatprep.subr.mxu0 0.0
    %626 = vmatpush1.msra.mxu0 0.0
    %627 = vmatprep.subr.mxu0 0.0
    %628 = vmatpush1.msra.mxu0 0.0
    %629 = vmatprep.subr.mxu0 0.0
    %630 = vmatpush1.msra.mxu0 0.0
    %631 = vmatprep.subr.mxu0 0.0
    %632 = vmatpush1.msra.mxu0 0.0
    %633 = vmatprep.subr.mxu0 0.0
    %634 = vmatpush1.msra.mxu0 0.0
    %635 = vmatprep.subr.mxu0 0.0
    %636 = vmatpush1.msra.mxu0 0.0
    %637 = vmatprep.subr.mxu0 0.0
    %638 = vmatpush1.msra.mxu0 0.0
    %639 = vmatprep.subr.mxu0 0.0
    %640 = vmatpush1.msra.mxu0 0.0
    %641 = vmatprep.subr.mxu0 0.0
    %642 = vmatpush1.msra.mxu0 0.0
    %643 = vmatprep.subr.mxu0 0.0
    %644 = vmatpush1.msra.mxu0 0.0
    %645 = vmatprep.subr.mxu0 0.0
    %646 = vmatpush1.msra.mxu0 0.0
    %647 = vmatprep.subr.mxu0 0.0
    %648 = vmatpush1.msra.mxu0 0.0
    %649 = vmatprep.subr.mxu0 0.0
    %650 = vmatpush1.msra.mxu0 0.0
    %651 = vmatprep.subr.mxu0 0.0
    %652 = vmatpush1.msra.mxu0 0.0
    %653 = vmatprep.subr.mxu0 0.0
    %654 = vmatpush1.msra.mxu0 0.0
    %655 = vmatprep.subr.mxu0 0.0
    %656 = vmatpush1.msra.mxu0 0.0
    %657 = vmatprep.subr.mxu0 0.0
    %658 = vmatpush1.msra.mxu0 0.0
    %659 = vmatprep.subr.mxu0 0.0
    %660 = vmatpush1.msra.mxu0 0.0
    %661 = vmatprep.subr.mxu0 0.0
    %662 = vmatpush1.msra.mxu0 0.0
    %663 = vmatprep.subr.mxu0 0.0
    %664 = vmatpush1.msra.mxu0 0.0
    %665 = vmatprep.subr.mxu0 0.0
    %666 = vmatpush1.msra.mxu0 0.0
    %667 = vmatprep.subr.mxu0 0.0
    %668 = vmatpush1.msra.mxu0 0.0
    %669 = vmatprep.subr.mxu0 0.0
    %670 = vmatpush1.msra.mxu0 0.0
    %671 = vmatprep.mubr.f32.mxu0 0.0
    %672 = vmatmul.mubr.f32.gmra.mrb[0].mxu0 %v605
    %v673 = vpop.f32.mrb[0].mxu0
    %v674 = vadd.f32 0.0, %v673
    %v675 = vpop.f32.mrb[0].mxu0
    %676 = vdwg.mxu0
    %v677 = vadd.f32 %v282, %v674
    %v678 = vtanh.pop %v677
    %v679 = vmul.f32 %v678, 0.5
    %v680 = vadd.f32 %v679, 0.5
    %v681 = vmul.f32 %v680, %v595
    %683 = vrot.lane.b32.xlu0 %v678, 64
    %v684 = vpop.permute.xlu0 %683
    %v686 = vmul.f32 %v680, %v684
    %688 = vrot.lane.b32.xlu0 %v686, 32
    %v689 = vpop.permute.xlu0 %688
    %v691 = vadd.f32 %v681, %v689
    %v692 = vtanh.pop %v691
    %694 = vrot.lane.b32.xlu0 %v692, 64
    %v695 = vpop.permute.xlu0 %694
    %v697 = vmul.f32 %v680, %v695
    %699 = vrot.lane.b32.xlu0 %v697, 32
    %v700 = vpop.permute.xlu0 %699
    %v701 = vsel %vm311, %v700, 0
    %703 = vmatprep.subr.mxu0 0.0
    %704 = vmatpush1.msra.mxu0 %v305
    %705 = vmatprep.subr.mxu0 0.0
    %706 = vmatpush1.msra.mxu0 %v306
    %707 = vmatprep.subr.mxu0 0.0
    %708 = vmatpush1.msra.mxu0 %v307
    %709 = vmatprep.subr.mxu0 0.0
    %710 = vmatpush1.msra.mxu0 %v308
    %711 = vmatprep.subr.mxu0 0.0
    %712 = vmatpush1.msra.mxu0 0.0
    %713 = vmatprep.subr.mxu0 0.0
    %714 = vmatpush1.msra.mxu0 0.0
    %715 = vmatprep.subr.mxu0 0.0
    %716 = vmatpush1.msra.mxu0 0.0
    %717 = vmatprep.subr.mxu0 0.0
    %718 = vmatpush1.msra.mxu0 0.0
    %719 = vmatprep.subr.mxu0 0.0
    %720 = vmatpush1.msra.mxu0 0.0
    %721 = vmatprep.subr.mxu0 0.0
    %722 = vmatpush1.msra.mxu0 0.0
    %723 = vmatprep.subr.mxu0 0.0
    %724 = vmatpush1.msra.mxu0 0.0
    %725 = vmatprep.subr.mxu0 0.0
    %726 = vmatpush1.msra.mxu0 0.0
    %727 = vmatprep.subr.mxu0 0.0
    %728 = vmatpush1.msra.mxu0 0.0
    %729 = vmatprep.subr.mxu0 0.0
    %730 = vmatpush1.msra.mxu0 0.0
    %731 = vmatprep.subr.mxu0 0.0
    %732 = vmatpush1.msra.mxu0 0.0
    %733 = vmatprep.subr.mxu0 0.0
    %734 = vmatpush1.msra.mxu0 0.0
    %735 = vmatprep.subr.mxu0 0.0
    %736 = vmatpush1.msra.mxu0 0.0
    %737 = vmatprep.subr.mxu0 0.0
    %738 = vmatpush1.msra.mxu0 0.0
    %739 = vmatprep.subr.mxu0 0.0
    %740 = vmatpush1.msra.mxu0 0.0
    %741 = vmatprep.subr.mxu0 0.0
    %742 = vmatpush1.msra.mxu0 0.0
    %743 = vmatprep.subr.mxu0 0.0
    %744 = vmatpush1.msra.mxu0 0.0
    %745 = vmatprep.subr.mxu0 0.0
    %746 = vmatpush1.msra.mxu0 0.0
    %747 = vmatprep.subr.mxu0 0.0
    %748 = vmatpush1.msra.mxu0 0.0
    %749 = vmatprep.subr.mxu0 0.0
    %750 = vmatpush1.msra.mxu0 0.0
    %751 = vmatprep.subr.mxu0 0.0
    %752 = vmatpush1.msra.mxu0 0.0
    %753 = vmatprep.subr.mxu0 0.0
    %754 = vmatpush1.msra.mxu0 0.0
    %755 = vmatprep.subr.mxu0 0.0
    %756 = vmatpush1.msra.mxu0 0.0
    %757 = vmatprep.subr.mxu0 0.0
    %758 = vmatpush1.msra.mxu0 0.0
    %759 = vmatprep.subr.mxu0 0.0
    %760 = vmatpush1.msra.mxu0 0.0
    %761 = vmatprep.subr.mxu0 0.0
    %762 = vmatpush1.msra.mxu0 0.0
    %763 = vmatprep.subr.mxu0 0.0
    %764 = vmatpush1.msra.mxu0 0.0
    %765 = vmatprep.subr.mxu0 0.0
    %766 = vmatpush1.msra.mxu0 0.0
    %767 = vmatprep.mubr.f32.mxu0 0.0
    %768 = vmatmul.mubr.f32.gmra.mrb[0].mxu0 %v701
    %v769 = vpop.f32.mrb[0].mxu0
    %v770 = vadd.f32 0.0, %v769
    %v771 = vpop.f32.mrb[0].mxu0
    %772 = vdwg.mxu0
    %v773 = vadd.f32 %v287, %v770
    %v774 = vtanh.pop %v773
    %v775 = vmul.f32 %v774, 0.5
    %v776 = vadd.f32 %v775, 0.5
    %v777 = vmul.f32 %v776, %v691
    %779 = vrot.lane.b32.xlu0 %v774, 64
    %v780 = vpop.permute.xlu0 %779
    %v782 = vmul.f32 %v776, %v780
    %784 = vrot.lane.b32.xlu0 %v782, 32
    %v785 = vpop.permute.xlu0 %784
    %v787 = vadd.f32 %v777, %v785
    %v788 = vtanh.pop %v787
    %790 = vrot.lane.b32.xlu0 %v788, 64
    %v791 = vpop.permute.xlu0 %790
    %v793 = vmul.f32 %v776, %v791
    %795 = vrot.lane.b32.xlu0 %v793, 32
    %v796 = vpop.permute.xlu0 %795
    %v797 = vsel %vm311, %v796, 0
    %799 = vmatprep.subr.mxu0 0.0
    %800 = vmatpush1.msra.mxu0 %v305
    %801 = vmatprep.subr.mxu0 0.0
    %802 = vmatpush1.msra.mxu0 %v306
    %803 = vmatprep.subr.mxu0 0.0
    %804 = vmatpush1.msra.mxu0 %v307
    %805 = vmatprep.subr.mxu0 0.0
    %806 = vmatpush1.msra.mxu0 %v308
    %807 = vmatprep.subr.mxu0 0.0
    %808 = vmatpush1.msra.mxu0 0.0
    %809 = vmatprep.subr.mxu0 0.0
    %810 = vmatpush1.msra.mxu0 0.0
    %811 = vmatprep.subr.mxu0 0.0
    %812 = vmatpush1.msra.mxu0 0.0
    %813 = vmatprep.subr.mxu0 0.0
    %814 = vmatpush1.msra.mxu0 0.0
    %815 = vmatprep.subr.mxu0 0.0
    %816 = vmatpush1.msra.mxu0 0.0
    %817 = vmatprep.subr.mxu0 0.0
    %818 = vmatpush1.msra.mxu0 0.0
    %819 = vmatprep.subr.mxu0 0.0
    %820 = vmatpush1.msra.mxu0 0.0
    %821 = vmatprep.subr.mxu0 0.0
    %822 = vmatpush1.msra.mxu0 0.0
    %823 = vmatprep.subr.mxu0 0.0
    %824 = vmatpush1.msra.mxu0 0.0
    %825 = vmatprep.subr.mxu0 0.0
    %826 = vmatpush1.msra.mxu0 0.0
    %827 = vmatprep.subr.mxu0 0.0
    %828 = vmatpush1.msra.mxu0 0.0
    %829 = vmatprep.subr.mxu0 0.0
    %830 = vmatpush1.msra.mxu0 0.0
    %831 = vmatprep.subr.mxu0 0.0
    %832 = vmatpush1.msra.mxu0 0.0
    %833 = vmatprep.subr.mxu0 0.0
    %834 = vmatpush1.msra.mxu0 0.0
    %835 = vmatprep.subr.mxu0 0.0
    %836 = vmatpush1.msra.mxu0 0.0
    %837 = vmatprep.subr.mxu0 0.0
    %838 = vmatpush1.msra.mxu0 0.0
    %839 = vmatprep.subr.mxu0 0.0
    %840 = vmatpush1.msra.mxu0 0.0
    %841 = vmatprep.subr.mxu0 0.0
    %842 = vmatpush1.msra.mxu0 0.0
    %843 = vmatprep.subr.mxu0 0.0
    %844 = vmatpush1.msra.mxu0 0.0
    %845 = vmatprep.subr.mxu0 0.0
    %846 = vmatpush1.msra.mxu0 0.0
    %847 = vmatprep.subr.mxu0 0.0
    %848 = vmatpush1.msra.mxu0 0.0
    %849 = vmatprep.subr.mxu0 0.0
    %850 = vmatpush1.msra.mxu0 0.0
    %851 = vmatprep.subr.mxu0 0.0
    %852 = vmatpush1.msra.mxu0 0.0
    %853 = vmatprep.subr.mxu0 0.0
    %854 = vmatpush1.msra.mxu0 0.0
    %855 = vmatprep.subr.mxu0 0.0
    %856 = vmatpush1.msra.mxu0 0.0
    %857 = vmatprep.subr.mxu0 0.0
    %858 = vmatpush1.msra.mxu0 0.0
    %859 = vmatprep.subr.mxu0 0.0
    %860 = vmatpush1.msra.mxu0 0.0
    %861 = vmatprep.subr.mxu0 0.0
    %862 = vmatpush1.msra.mxu0 0.0
    %863 = vmatprep.mubr.f32.mxu0 0.0
    %864 = vmatmul.mubr.f32.gmra.mrb[0].mxu0 %v797
    %v865 = vpop.f32.mrb[0].mxu0
    %v866 = vadd.f32 0.0, %v865
    %v867 = vpop.f32.mrb[0].mxu0
    %868 = vdwg.mxu0
    %v869 = vadd.f32 %v292, %v866
    %v870 = vtanh.pop %v869
    %v871 = vmul.f32 %v870, 0.5
    %v872 = vadd.f32 %v871, 0.5
    %v873 = vmul.f32 %v872, %v787
    %875 = vrot.lane.b32.xlu0 %v870, 64
    %v876 = vpop.permute.xlu0 %875
    %v878 = vmul.f32 %v872, %v876
    %880 = vrot.lane.b32.xlu0 %v878, 32
    %v881 = vpop.permute.xlu0 %880
    %v883 = vadd.f32 %v873, %v881
    %v884 = vtanh.pop %v883
    %886 = vrot.lane.b32.xlu0 %v884, 64
    %v887 = vpop.permute.xlu0 %886
    %v889 = vmul.f32 %v872, %v887
    %891 = vrot.lane.b32.xlu0 %v889, 32
    %v892 = vpop.permute.xlu0 %891
    %v893 = vsel %vm311, %v892, 0
    %895 = vmatprep.subr.mxu0 0.0
    %896 = vmatpush1.msra.mxu0 %v305
    %897 = vmatprep.subr.mxu0 0.0
    %898 = vmatpush1.msra.mxu0 %v306
    %899 = vmatprep.subr.mxu0 0.0
    %900 = vmatpush1.msra.mxu0 %v307
    %901 = vmatprep.subr.mxu0 0.0
    %902 = vmatpush1.msra.mxu0 %v308
    %903 = vmatprep.subr.mxu0 0.0
    %904 = vmatpush1.msra.mxu0 0.0
    %905 = vmatprep.subr.mxu0 0.0
    %906 = vmatpush1.msra.mxu0 0.0
    %907 = vmatprep.subr.mxu0 0.0
    %908 = vmatpush1.msra.mxu0 0.0
    %909 = vmatprep.subr.mxu0 0.0
    %910 = vmatpush1.msra.mxu0 0.0
    %911 = vmatprep.subr.mxu0 0.0
    %912 = vmatpush1.msra.mxu0 0.0
    %913 = vmatprep.subr.mxu0 0.0
    %914 = vmatpush1.msra.mxu0 0.0
    %915 = vmatprep.subr.mxu0 0.0
    %916 = vmatpush1.msra.mxu0 0.0
    %917 = vmatprep.subr.mxu0 0.0
    %918 = vmatpush1.msra.mxu0 0.0
    %919 = vmatprep.subr.mxu0 0.0
    %920 = vmatpush1.msra.mxu0 0.0
    %921 = vmatprep.subr.mxu0 0.0
    %922 = vmatpush1.msra.mxu0 0.0
    %923 = vmatprep.subr.mxu0 0.0
    %924 = vmatpush1.msra.mxu0 0.0
    %925 = vmatprep.subr.mxu0 0.0
    %926 = vmatpush1.msra.mxu0 0.0
    %927 = vmatprep.subr.mxu0 0.0
    %928 = vmatpush1.msra.mxu0 0.0
    %929 = vmatprep.subr.mxu0 0.0
    %930 = vmatpush1.msra.mxu0 0.0
    %931 = vmatprep.subr.mxu0 0.0
    %932 = vmatpush1.msra.mxu0 0.0
    %933 = vmatprep.subr.mxu0 0.0
    %934 = vmatpush1.msra.mxu0 0.0
    %935 = vmatprep.subr.mxu0 0.0
    %936 = vmatpush1.msra.mxu0 0.0
    %937 = vmatprep.subr.mxu0 0.0
    %938 = vmatpush1.msra.mxu0 0.0
    %939 = vmatprep.subr.mxu0 0.0
    %940 = vmatpush1.msra.mxu0 0.0
    %941 = vmatprep.subr.mxu0 0.0
    %942 = vmatpush1.msra.mxu0 0.0
    %943 = vmatprep.subr.mxu0 0.0
    %944 = vmatpush1.msra.mxu0 0.0
    %945 = vmatprep.subr.mxu0 0.0
    %946 = vmatpush1.msra.mxu0 0.0
    %947 = vmatprep.subr.mxu0 0.0
    %948 = vmatpush1.msra.mxu0 0.0
    %949 = vmatprep.subr.mxu0 0.0
    %950 = vmatpush1.msra.mxu0 0.0
    %951 = vmatprep.subr.mxu0 0.0
    %952 = vmatpush1.msra.mxu0 0.0
    %953 = vmatprep.subr.mxu0 0.0
    %954 = vmatpush1.msra.mxu0 0.0
    %955 = vmatprep.subr.mxu0 0.0
    %956 = vmatpush1.msra.mxu0 0.0
    %957 = vmatprep.subr.mxu0 0.0
    %958 = vmatpush1.msra.mxu0 0.0
    %959 = vmatprep.mubr.f32.mxu0 0.0
    %960 = vmatmul.mubr.f32.gmra.mrb[0].mxu0 %v893
    %v961 = vpop.f32.mrb[0].mxu0
    %v962 = vadd.f32 0.0, %v961
    %v963 = vpop.f32.mrb[0].mxu0
    %964 = vdwg.mxu0
    %v965 = vadd.f32 %v297, %v962
    %v966 = vtanh.pop %v965
    %v967 = vmul.f32 %v966, 0.5
    %v968 = vadd.f32 %v967, 0.5
    %v969 = vmul.f32 %v968, %v883
    %971 = vrot.lane.b32.xlu0 %v966, 64
    %v972 = vpop.permute.xlu0 %971
    %v974 = vmul.f32 %v968, %v972
    %976 = vrot.lane.b32.xlu0 %v974, 32
    %v977 = vpop.permute.xlu0 %976
    %v979 = vadd.f32 %v969, %v977
    %v980 = vtanh.pop %v979
    %982 = vrot.lane.b32.xlu0 %v980, 64
    %v983 = vpop.permute.xlu0 %982
    %v985 = vmul.f32 %v968, %v983
    %987 = vrot.lane.b32.xlu0 %v985, 32
    %v988 = vpop.permute.xlu0 %987
    %v989 = vsel %vm311, %v988, 0
    %991 = vmatprep.subr.mxu0 0.0
    %992 = vmatpush1.msra.mxu0 %v305
    %993 = vmatprep.subr.mxu0 0.0
    %994 = vmatpush1.msra.mxu0 %v306
    %995 = vmatprep.subr.mxu0 0.0
    %996 = vmatpush1.msra.mxu0 %v307
    %997 = vmatprep.subr.mxu0 0.0
    %998 = vmatpush1.msra.mxu0 %v308
    %999 = vmatprep.subr.mxu0 0.0
    %1000 = vmatpush1.msra.mxu0 0.0
    %1001 = vmatprep.subr.mxu0 0.0
    %1002 = vmatpush1.msra.mxu0 0.0
    %1003 = vmatprep.subr.mxu0 0.0
    %1004 = vmatpush1.msra.mxu0 0.0
    %1005 = vmatprep.subr.mxu0 0.0
    %1006 = vmatpush1.msra.mxu0 0.0
    %1007 = vmatprep.subr.mxu0 0.0
    %1008 = vmatpush1.msra.mxu0 0.0
    %1009 = vmatprep.subr.mxu0 0.0
    %1010 = vmatpush1.msra.mxu0 0.0
    %1011 = vmatprep.subr.mxu0 0.0
    %1012 = vmatpush1.msra.mxu0 0.0
    %1013 = vmatprep.subr.mxu0 0.0
    %1014 = vmatpush1.msra.mxu0 0.0
    %1015 = vmatprep.subr.mxu0 0.0
    %1016 = vmatpush1.msra.mxu0 0.0
    %1017 = vmatprep.subr.mxu0 0.0
    %1018 = vmatpush1.msra.mxu0 0.0
    %1019 = vmatprep.subr.mxu0 0.0
    %1020 = vmatpush1.msra.mxu0 0.0
    %1021 = vmatprep.subr.mxu0 0.0
    %1022 = vmatpush1.msra.mxu0 0.0
    %1023 = vmatprep.subr.mxu0 0.0
    %1024 = vmatpush1.msra.mxu0 0.0
    %1025 = vmatprep.subr.mxu0 0.0
    %1026 = vmatpush1.msra.mxu0 0.0
    %1027 = vmatprep.subr.mxu0 0.0
    %1028 = vmatpush1.msra.mxu0 0.0
    %1029 = vmatprep.subr.mxu0 0.0
    %1030 = vmatpush1.msra.mxu0 0.0
    %1031 = vmatprep.subr.mxu0 0.0
    %1032 = vmatpush1.msra.mxu0 0.0
    %1033 = vmatprep.subr.mxu0 0.0
    %1034 = vmatpush1.msra.mxu0 0.0
    %1035 = vmatprep.subr.mxu0 0.0
    %1036 = vmatpush1.msra.mxu0 0.0
    %1037 = vmatprep.subr.mxu0 0.0
    %1038 = vmatpush1.msra.mxu0 0.0
    %1039 = vmatprep.subr.mxu0 0.0
    %1040 = vmatpush1.msra.mxu0 0.0
    %1041 = vmatprep.subr.mxu0 0.0
    %1042 = vmatpush1.msra.mxu0 0.0
    %1043 = vmatprep.subr.mxu0 0.0
    %1044 = vmatpush1.msra.mxu0 0.0
    %1045 = vmatprep.subr.mxu0 0.0
    %1046 = vmatpush1.msra.mxu0 0.0
    %1047 = vmatprep.subr.mxu0 0.0
    %1048 = vmatpush1.msra.mxu0 0.0
    %1049 = vmatprep.subr.mxu0 0.0
    %1050 = vmatpush1.msra.mxu0 0.0
    %1051 = vmatprep.subr.mxu0 0.0
    %1052 = vmatpush1.msra.mxu0 0.0
    %1053 = vmatprep.subr.mxu0 0.0
    %1054 = vmatpush1.msra.mxu0 0.0
    %1055 = vmatprep.mubr.f32.mxu0 0.0
    %1056 = vmatmul.mubr.f32.gmra.mrb[0].mxu0 %v989
    %v1057 = vpop.f32.mrb[0].mxu0
    %v1058 = vadd.f32 0.0, %v1057
    %v1059 = vpop.f32.mrb[0].mxu0
    %1060 = vdwg.mxu0
    %v1061 = vadd.f32 %v302, %v1058
    %v1062 = vtanh.pop %v1061
    %v1063 = vmul.f32 %v1062, 0.5
    %v1064 = vadd.f32 %v1063, 0.5
    %v1065 = vmul.f32 %v1064, %v979
    %1067 = vrot.lane.b32.xlu0 %v1062, 64
    %v1068 = vpop.permute.xlu0 %1067
    %v1070 = vmul.f32 %v1064, %v1068
    %1072 = vrot.lane.b32.xlu0 %v1070, 32
    %v1073 = vpop.permute.xlu0 %1072
    %v1075 = vadd.f32 %v1065, %v1073
    %v1076 = vtanh.pop %v1075
    %1078 = vrot.lane.b32.xlu0 %v1076, 64
    %v1079 = vpop.permute.xlu0 %1078
    %v1081 = vmul.f32 %v1064, %v1079
    %1083 = vrot.lane.b32.xlu0 %v1081, 32
    %v1084 = vpop.permute.xlu0 %1083
    %1086 = vst.msk [vmem:[#allocation2] sm:$0xff] %vm311, %v1084
    // Predicated region
    $region34: #{tpu_custom_call.1} parent=1 // pred_check
      _
    $region35: #{tpu_custom_call.1} parent=1 // pred_check_branch
      %1088 = sbr.rel (0) target = $region37
    $region36: #{tpu_custom_call.1} parent=1 // pred_region
      %s1090 = ssub.s32 128, 128
      %1091 = vsyncadd [#allocation3], %s1090
      %s1093 = sshll.u32 [#allocation2], 4
      %s1094 = int_to_ptr.vmem [resolvable:$true] %s1093
      %1096 = dma.vmem_to_hbm [thread:$0]  %s1094, 128, %s8, [#allocation3]
    $region37: #{tpu_custom_call.1} parent=1 // pred_fallthru
      _
    // Predicated region
    $region38: #{tpu_custom_call.1} parent=1 // pred_check
      _
    $region39: #{tpu_custom_call.1} parent=1 // pred_check_branch
      %1098 = sbr.rel (0) target = $region41
    $region40: #{tpu_custom_call.1} parent=1 // pred_region
      %1099 = dma.done [#allocation3], 128
    $region41: #{tpu_custom_call.1} parent=1 // pred_fallthru
      _
    %1100 = vsyncpa [#allocation3], 1

</llo_original>
